<compile_context>
chip_gen: v5e
topology: v5e:2x2
jax: 0.10.0
libtpu: 0.0.40
codegen_flags: <defaults>
</compile_context>

<pallas_src>
import functools

import jax
import jax.numpy as jnp
from jax.experimental import pallas as pl
from jax.experimental.pallas import tpu as pltpu

SLOPE = 0.2                     # LeakyReLU default slope in ActLayer
_VMEM_LIMIT = 32 << 20          # explicit scoped-VMEM limit (safe on v5e..v7x)
_BLOCK_BYTES = 4 << 20          # per-block budget (x2 arrays x2 buffers = 16 MiB)


# ----------------------------------------------------------------------------- tiling policy
def _tiles(rows, cols, itemsize, max_block_bytes=_BLOCK_BYTES, lane_cap=16384):
    """Pick (row_tile, lane_tile).

    Lane tile is a multiple of 128 (or the full width when cols < 128); row
    tile is a multiple of 8 (or the full height when rows < 8).  Blocks never
    exceed the array dims except on the ragged pl.cdiv edge, which Pallas masks.
    """
    if cols < 128:
        bc = cols                                   # full dim: allowed by (8,128) rule
    else:
        bc = min(lane_cap, (cols // 128) * 128)     # lane-dense stores
    if rows < 8:
        br = rows                                   # full dim
    else:
        cap = max(8, (max_block_bytes // max(1, bc * itemsize)) // 8 * 8)
        br = min(cap, (rows // 8) * 8)
    return br, bc


# ----------------------------------------------------------------------------- kernels
def _eltwise_kernel(x_ref, o_ref, *, act, slope):
    x = x_ref[...]
    if act == 'relu':
        y = jnp.maximum(x, 0)
    elif act == 'leakyrelu':
        y = jnp.where(x >= 0, x, slope * x)
    elif act == 'silu':
        xf = x.astype(jnp.float32)
        y = xf * pl.reciprocal(1.0 + jnp.exp(-xf), approx=True)   # EUP slot
    elif act == 'gelu':
        # TODO(synk): nn.GELU() default is the exact erf form; tanh approximation
        # used here (max abs err ~1e-3) to stay on well-supported EUP ops.
        xf = x.astype(jnp.float32)
        c0 = 0.7978845608028654  # sqrt(2/pi)
        y = 0.5 * xf * (1.0 + jnp.tanh(c0 * (xf + 0.044715 * xf * xf * xf)))
    else:
        raise ValueError(f'unsupported activation: {act}')
    o_ref[...] = y.astype(o_ref.dtype)


def _prelu_kernel(x_ref, a_ref, o_ref):
    x = x_ref[...]
    a = a_ref[...].astype(x.dtype)          # (br, 1) per-row slope, lane-broadcast
    o_ref[...] = jnp.where(x >= 0, x, a * x).astype(o_ref.dtype)


def _simple_gate_kernel(x_ref, w_ref, b_ref, o_ref, *, C):
    x = x_ref[...].astype(jnp.float32)      # (C, T)  channels on sublanes, H*W on lanes
    w = w_ref[...].astype(jnp.float32)      # (2C, C) resident across the spatial axis
    y = jnp.dot(w, x, preferred_element_type=jnp.float32) + b_ref[...]   # (2C, T)
    o_ref[...] = (y[:C] * y[C:]).astype(o_ref.dtype)                      # chunk + gate


# ----------------------------------------------------------------------------- wrappers
def _eltwise_forward(x, act, slope=SLOPE):
    if act == 'none':
        return x                             # direct pass; matches `lambda x: x * 1.0`
    N, C, H, W = x.shape
    rows, cols = N * C, H * W
    x2 = x.reshape(rows, cols)               # contiguous reshape: no HBM copy
    br, bc = _tiles(rows, cols, x.dtype.itemsize)
    grid = (pl.cdiv(rows, br), pl.cdiv(cols, bc))

    out = pl.pallas_call(
        functools.partial(_eltwise_kernel, act=act, slope=slope),
        out_shape=jax.ShapeDtypeStruct((rows, cols), x.dtype),
        grid=grid,
        in_specs=[pl.BlockSpec((br, bc), lambda i, j: (i, j))],
        out_specs=pl.BlockSpec((br, bc), lambda i, j: (i, j)),
        compiler_params=pltpu.CompilerParams(
            dimension_semantics=("parallel", "parallel"),
            vmem_limit_bytes=_VMEM_LIMIT),
    )(x2)
    return out.reshape(N, C, H, W)


def _prelu_forward(x, alpha):
    N, C, H, W = x.shape
    rows, cols = N * C, H * W
    x2 = x.reshape(rows, cols)               # contiguous reshape: no HBM copy
    a_rows = jnp.tile(alpha.astype(jnp.float32), (N,)).reshape(rows, 1)  # tiny (N*C,1)
    br, bc = _tiles(rows, cols, x.dtype.itemsize)
    grid = (pl.cdiv(rows, br), pl.cdiv(cols, bc))

    out = pl.pallas_call(
        _prelu_kernel,
        out_shape=jax.ShapeDtypeStruct((rows, cols), x.dtype),
        grid=grid,
        in_specs=[pl.BlockSpec((br, bc), lambda i, j: (i, j)),
                  pl.BlockSpec((br, 1), lambda i, j: (i, 0))],
        out_specs=pl.BlockSpec((br, bc), lambda i, j: (i, j)),
        compiler_params=pltpu.CompilerParams(
            dimension_semantics=("parallel", "parallel"),
            vmem_limit_bytes=_VMEM_LIMIT),
    )(x2, a_rows)
    return out.reshape(N, C, H, W)


def _simple_gate_forward(x, w, b):
    N, C, H, W = x.shape
    HW = H * W
    w2d = w.reshape(2 * C, C).astype(jnp.float32)     # (out=2C, in=C)
    b2d = b.reshape(2 * C, 1).astype(jnp.float32)
    x3 = x.reshape(N, C, HW)                          # NCHW-native, free reshape

    itemsize = x.dtype.itemsize
    if HW < 128:
        hw_tile = HW                                  # full dim (allowed)
    else:
        cap = max(128, ((2 << 20) // max(1, C * itemsize)) // 128 * 128)
        hw_tile = min(cap, 8192, (HW // 128) * 128)   # lane-dense spatial tile
    grid = (N, pl.cdiv(HW, hw_tile))

    out = pl.pallas_call(
        functools.partial(_simple_gate_kernel, C=C),
        out_shape=jax.ShapeDtypeStruct((N, C, HW), x.dtype),
        grid=grid,
        in_specs=[pl.BlockSpec((None, C, hw_tile), lambda n, j: (n, 0, j)),
                  pl.BlockSpec((2 * C, C), lambda n, j: (0, 0)),
                  pl.BlockSpec((2 * C, 1), lambda n, j: (0, 0))],
        out_specs=pl.BlockSpec((None, C, hw_tile), lambda n, j: (n, 0, j)),
        compiler_params=pltpu.CompilerParams(
            dimension_semantics=("parallel", "parallel"),
            vmem_limit_bytes=_VMEM_LIMIT),
    )(x3, w2d, b2d)
    return out.reshape(N, C, H, W)


def act_layer_forward(x, relu_type='leakyrelu', params=None):
    """Pallas implementation of ActLayer.forward (NCHW in / NCHW out)."""
    t = relu_type.lower()
    if t in ('relu', 'leakyrelu', 'silu', 'gelu', 'none'):
        return _eltwise_forward(x, t)
    if t == 'prelu':
        return _prelu_forward(x, params['prelu_alpha'])
    if t == 'simplegate':
        return _simple_gate_forward(x, params['sg_w'], params['sg_b'])
    raise AssertionError(f'activation type {relu_type} not support.')


# ----------------------------------------------------------------------------- reference
def act_layer_reference(x, relu_type='leakyrelu', params=None):
    """Pure-JAX reference matching the PyTorch module."""
    t = relu_type.lower()
    if t == 'relu':
        return jnp.maximum(x, 0.0)
    if t == 'leakyrelu':
        return jnp.where(x >= 0, x, SLOPE * x)
    if t == 'prelu':
        a = params['prelu_alpha'][None, :, None, None]
        return jnp.where(x >= 0, x, a * x)
    if t == 'none':
        return x * 1.0
    if t == 'silu':
        return x * jax.nn.sigmoid(x)
    if t == 'gelu':
        return jax.nn.gelu(x, approximate=False)      # PyTorch nn.GELU() exact
    if t == 'simplegate':
        _, C, _, _ = x.shape
        w2d = params['sg_w'].reshape(2 * C, C)
        y = jnp.einsum('nchw,oc->nohw', x, w2d,
                       precision=jax.lax.Precision.HIGHEST)
        y = y + params['sg_b'][None, :, None, None]
        x1, x2 = jnp.split(y, 2, axis=1)
        return x1 * x2
    raise AssertionError(t)


# ----------------------------------------------------------------------------- test
if __name__ == "__main__":
    key = jax.random.PRNGKey(0)
    kx, ka, kw, kb, ko = jax.random.split(key, 5)

    N, C, H, W = 2, 32, 16, 16
    x = jax.random.normal(kx, (N, C, H, W), jnp.float32)
    params = {
        'prelu_alpha': 0.25 + 0.05 * jax.random.normal(ka, (C,), jnp.float32),
        'sg_w': (1.0 / jnp.sqrt(C)) * jax.random.normal(kw, (2 * C, C, 1, 1), jnp.float32),
        'sg_b': 0.1 * jax.random.normal(kb, (2 * C,), jnp.float32),
    }

    cases = [
        ('leakyrelu', 1e-6),   # ActLayer default
        ('relu', 1e-6),
        ('none', 1e-6),
        ('prelu', 1e-6),
        ('silu', 5e-3),        # approx EUP reciprocal
        ('gelu', 5e-3),        # tanh approximation vs exact erf reference
        ('simplegate', 5e-2),  # DEFAULT MXU precision vs HIGHEST reference
    ]
    for name, tol in cases:
        out = jax.block_until_ready(act_layer_forward(x, name, params))
        ref = jax.block_until_ready(act_layer_reference(x, name, params))
        assert out.shape == x.shape, (name, out.shape)
        err = float(jnp.max(jnp.abs(out - ref)))
        assert bool(jnp.allclose(out, ref, atol=tol, rtol=tol)), (name, err)

    # Ragged-edge / non-aligned shapes (exercise the no-pad masked-edge path).
    x_odd = jax.random.normal(ko, (3, 17, 10, 13), jnp.float32)
    for name, tol in [('leakyrelu', 1e-6), ('silu', 5e-3)]:
        out = jax.block_until_ready(act_layer_forward(x_odd, name))
        ref = jax.block_until_ready(act_layer_reference(x_odd, name))
        assert out.shape == x_odd.shape, (name, out.shape)
        err = float(jnp.max(jnp.abs(out - ref)))
        assert bool(jnp.allclose(out, ref, atol=tol, rtol=tol)), (name, err)

    x_odd_sg = jax.random.normal(ko, (2, C, 10, 13), jnp.float32)   # HW=130, ragged lanes
    out = jax.block_until_ready(act_layer_forward(x_odd_sg, 'simplegate', params))
    ref = jax.block_until_ready(act_layer_reference(x_odd_sg, 'simplegate', params))
    assert out.shape == x_odd_sg.shape
    assert bool(jnp.allclose(out, ref, atol=5e-2, rtol=5e-2)), \
        float(jnp.max(jnp.abs(out - ref)))

    print("KERNEL_OK")
</pallas_src>

<mosaic_0001>
module attributes {stable_mosaic.version = 11 : i64} {
  func.func @_eltwise_kernel(%arg0: i32, %arg1: i32, %arg2: memref<64x256xf32, #tpu.memory_space<vmem>>, %arg3: memref<64x256xf32, #tpu.memory_space<vmem>>) attributes {dimension_semantics = [#tpu.dimension_semantics<parallel>, #tpu.dimension_semantics<parallel>], iteration_bounds = array<i64: 1, 1>, scalar_prefetch = 0 : i64, scratch_operands = 0 : i64, tpu.core_type = #tpu.core_type<tc>, window_params = [{transform_indices = @transform_0, window_bounds = array<i64: 64, 256>}, {transform_indices = @transform_1, window_bounds = array<i64: 64, 256>}]} {
    %c0 = arith.constant 0 : index
    %c0_0 = arith.constant 0 : index
    %0 = vector.load %arg2[%c0, %c0_0] : memref<64x256xf32, #tpu.memory_space<vmem>>, vector<64x256xf32>
    %cst = arith.constant 0.000000e+00 : f32
    %1 = vector.broadcast %cst : f32 to vector<64x256xf32>
    %2 = arith.cmpf oge, %0, %1 : vector<64x256xf32>
    %cst_1 = arith.constant 2.000000e-01 : f32
    %3 = vector.broadcast %cst_1 : f32 to vector<64x256xf32>
    %4 = arith.mulf %3, %0 : vector<64x256xf32>
    %5 = arith.select %2, %0, %4 : vector<64x256xi1>, vector<64x256xf32>
    %c0_2 = arith.constant 0 : index
    %c0_3 = arith.constant 0 : index
    %6 = vector.load %arg3[%c0_2, %c0_3] : memref<64x256xf32, #tpu.memory_space<vmem>>, vector<64x256xf32>
    tpu.vector_store %arg3[%c0_2, %c0_3], %5 {strides = array<i32>} : memref<64x256xf32, #tpu.memory_space<vmem>>, vector<64x256xf32>,
    return
  }
  func.func @transform_0(%arg0: i32, %arg1: i32) -> (i32, i32) {
    %c0_i32 = arith.constant 0 : i32
    return %arg0, %arg1 : i32, i32
  }
  func.func @transform_1(%arg0: i32, %arg1: i32) -> (i32, i32) {
    %c0_i32 = arith.constant 0 : i32
    return %arg0, %arg1 : i32, i32
  }
}

</mosaic_0001>

<llo_original>
// kernel: tpu_custom_call.1
$region0: #{tpu_custom_call.1}
  #allocation0 [shape = 'u32[]', space=smem, size = 0x4, offset = 0x4, fixed_abs, tag = 'smem constant byte address 0x4 - core index']
  #allocation1 [shape = 'u32[72,128]{1,0:T(1,128)}', space=vmem, size = 0x9000, scoped, tag = 'internal scratch']
  %s0 = inlined_call_operand.hbm [shape: f32[64,256], index: 0, kind: input, shape index: {}]
  %s1 = inlined_call_operand.hbm [shape: f32[64,256], index: 1, kind: output, shape index: {}]
  %s2 = sld [smem:[#allocation0]]
  $region18: #{tpu_custom_call.1} parent=0
    _
  %s4 = ssub.s32 1, %s2
  %s5 = scalar_select 0, %s4, %s2
  $region1: #{tpu_custom_call.1} parent=0
    #allocation2 [shape = 'u8[65536]{0}', space=vmem, size = 0x10000, scoped, tag = 'input window, operand 0, single buffered']
    #allocation3 [shape = 's32[1]{0}', space=sflag, size = 0x4, scoped, tag = 'scoped memory for tpu_custom_call.1']
    #allocation4 [shape = 's32[1]{0}', space=sflag, size = 0x4, scoped, tag = 'scoped memory for tpu_custom_call.1']
    #allocation5 [shape = 'u8[65536]{0}', space=vmem, size = 0x10000, scoped, tag = 'output window, operand 0, single buffered']
    %6 = vsyncpa [#allocation3], 0
    %7 = vsyncpa [#allocation4], 0
    // Predicated region
    $region2: #{tpu_custom_call.1} parent=1 // pred_check
      _
    $region3: #{tpu_custom_call.1} parent=1 // pred_check_branch
      %9 = sbr.rel (0) target = $region5
    $region4: #{tpu_custom_call.1} parent=1 // pred_region
      %11 = vsyncadd [#allocation3], 0
      %s12 = sshll.u32 %s0, 4
      %s13 = int_to_ptr.hbm [resolvable:$true] %s12
      %s14 = sshll.u32 [#allocation2], 4
      %s15 = int_to_ptr.vmem [resolvable:$true] %s14
      %20 = dma.hbm_to_vmem [thread:$0]  %s13, 2048, %s15, [#allocation3], 256, 256, 16
    $region5: #{tpu_custom_call.1} parent=1 // pred_fallthru
      _
    // Predicated region
    $region6: #{tpu_custom_call.1} parent=1 // pred_check
      _
    $region7: #{tpu_custom_call.1} parent=1 // pred_check_branch
      %22 = sbr.rel (0) target = $region9
    $region8: #{tpu_custom_call.1} parent=1 // pred_region
      %24 = dma.done [#allocation3], 2048
    $region9: #{tpu_custom_call.1} parent=1 // pred_fallthru
      _
    %v25 = vld [vmem:[#allocation2] sm:$0xff]
    %v26 = vld [vmem:[#allocation2 + $0x8] sm:$0xff]
    %v27 = vld [vmem:[#allocation2 + $0x10] sm:$0xff]
    %v28 = vld [vmem:[#allocation2 + $0x18] sm:$0xff]
    %v29 = vld [vmem:[#allocation2 + $0x20] sm:$0xff]
    %v30 = vld [vmem:[#allocation2 + $0x28] sm:$0xff]
    %v31 = vld [vmem:[#allocation2 + $0x30] sm:$0xff]
    %v32 = vld [vmem:[#allocation2 + $0x38] sm:$0xff]
    %v33 = vld [vmem:[#allocation2 + $0x40] sm:$0xff]
    %v34 = vld [vmem:[#allocation2 + $0x48] sm:$0xff]
    %v35 = vld [vmem:[#allocation2 + $0x50] sm:$0xff]
    %v36 = vld [vmem:[#allocation2 + $0x58] sm:$0xff]
    %v37 = vld [vmem:[#allocation2 + $0x60] sm:$0xff]
    %v38 = vld [vmem:[#allocation2 + $0x68] sm:$0xff]
    %v39 = vld [vmem:[#allocation2 + $0x70] sm:$0xff]
    %v40 = vld [vmem:[#allocation2 + $0x78] sm:$0xff]
    %vm41 = vcmp.ge.f32.partialorder %v25, 0.0
    %vm42 = vcmp.ge.f32.partialorder %v26, 0.0
    %vm43 = vcmp.ge.f32.partialorder %v27, 0.0
    %vm44 = vcmp.ge.f32.partialorder %v28, 0.0
    %vm45 = vcmp.ge.f32.partialorder %v29, 0.0
    %vm46 = vcmp.ge.f32.partialorder %v30, 0.0
    %vm47 = vcmp.ge.f32.partialorder %v31, 0.0
    %vm48 = vcmp.ge.f32.partialorder %v32, 0.0
    %vm49 = vcmp.ge.f32.partialorder %v33, 0.0
    %vm50 = vcmp.ge.f32.partialorder %v34, 0.0
    %vm51 = vcmp.ge.f32.partialorder %v35, 0.0
    %vm52 = vcmp.ge.f32.partialorder %v36, 0.0
    %vm53 = vcmp.ge.f32.partialorder %v37, 0.0
    %vm54 = vcmp.ge.f32.partialorder %v38, 0.0
    %vm55 = vcmp.ge.f32.partialorder %v39, 0.0
    %vm56 = vcmp.ge.f32.partialorder %v40, 0.0
    %v57 = vmul.f32 %v25, 0.2
    %v58 = vmul.f32 %v26, 0.2
    %v59 = vmul.f32 %v27, 0.2
    %v60 = vmul.f32 %v28, 0.2
    %v61 = vmul.f32 %v29, 0.2
    %v62 = vmul.f32 %v30, 0.2
    %v63 = vmul.f32 %v31, 0.2
    %v64 = vmul.f32 %v32, 0.2
    %v65 = vmul.f32 %v33, 0.2
    %v66 = vmul.f32 %v34, 0.2
    %v67 = vmul.f32 %v35, 0.2
    %v68 = vmul.f32 %v36, 0.2
    %v69 = vmul.f32 %v37, 0.2
    %v70 = vmul.f32 %v38, 0.2
    %v71 = vmul.f32 %v39, 0.2
    %v72 = vmul.f32 %v40, 0.2
    %v73 = vsel %vm41, %v25, %v57
    %v74 = vsel %vm42, %v26, %v58
    %v75 = vsel %vm43, %v27, %v59
    %v76 = vsel %vm44, %v28, %v60
    %v77 = vsel %vm45, %v29, %v61
    %v78 = vsel %vm46, %v30, %v62
    %v79 = vsel %vm47, %v31, %v63
    %v80 = vsel %vm48, %v32, %v64
    %v81 = vsel %vm49, %v33, %v65
    %v82 = vsel %vm50, %v34, %v66
    %v83 = vsel %vm51, %v35, %v67
    %v84 = vsel %vm52, %v36, %v68
    %v85 = vsel %vm53, %v37, %v69
    %v86 = vsel %vm54, %v38, %v70
    %v87 = vsel %vm55, %v39, %v71
    %v88 = vsel %vm56, %v40, %v72
    %89 = vst [vmem:[#allocation5] sm:$0xff] %v73
    %90 = vst [vmem:[#allocation5 + $0x8] sm:$0xff] %v74
    %91 = vst [vmem:[#allocation5 + $0x10] sm:$0xff] %v75
    %92 = vst [vmem:[#allocation5 + $0x18] sm:$0xff] %v76
    %93 = vst [vmem:[#allocation5 + $0x20] sm:$0xff] %v77
    %94 = vst [vmem:[#allocation5 + $0x28] sm:$0xff] %v78
    %95 = vst [vmem:[#allocation5 + $0x30] sm:$0xff] %v79
    %96 = vst [vmem:[#allocation5 + $0x38] sm:$0xff] %v80
    %97 = vst [vmem:[#allocation5 + $0x40] sm:$0xff] %v81
    %98 = vst [vmem:[#allocation5 + $0x48] sm:$0xff] %v82
    %99 = vst [vmem:[#allocation5 + $0x50] sm:$0xff] %v83
    %100 = vst [vmem:[#allocation5 + $0x58] sm:$0xff] %v84
    %101 = vst [vmem:[#allocation5 + $0x60] sm:$0xff] %v85
    %102 = vst [vmem:[#allocation5 + $0x68] sm:$0xff] %v86
    %103 = vst [vmem:[#allocation5 + $0x70] sm:$0xff] %v87
    %104 = vst [vmem:[#allocation5 + $0x78] sm:$0xff] %v88
    // Predicated region
    $region10: #{tpu_custom_call.1} parent=1 // pred_check
      _
    $region11: #{tpu_custom_call.1} parent=1 // pred_check_branch
      %106 = sbr.rel (0) target = $region13
    $region12: #{tpu_custom_call.1} parent=1 // pred_region
      %108 = vsyncadd [#allocation4], 0
      %s109 = sshll.u32 [#allocation5], 4
      %s110 = int_to_ptr.vmem [resolvable:$true] %s109
      %s111 = sshll.u32 %s1, 4
      %s112 = int_to_ptr.hbm [resolvable:$true] %s111
      %117 = dma.vmem_to_hbm [thread:$0]  %s110, 2048, %s112, [#allocation4], 256, 256, 16
    $region13: #{tpu_custom_call.1} parent=1 // pred_fallthru
      _
    // Predicated region
    $region14: #{tpu_custom_call.1} parent=1 // pred_check
      _
    $region15: #{tpu_custom_call.1} parent=1 // pred_check_branch
      %119 = sbr.rel (0) target = $region17
    $region16: #{tpu_custom_call.1} parent=1 // pred_region
      %121 = dma.done [#allocation4], 2048
    $region17: #{tpu_custom_call.1} parent=1 // pred_fallthru
      _
    %122 = vsyncpa [#allocation3], 1
    %123 = vsyncpa [#allocation4], 1

</llo_original>
